<compile_context>
chip_gen: v6e
topology: v6e:2x2x1
jax: 0.10.0
libtpu: 0.0.40
codegen_flags: <defaults>
</compile_context>

<pallas_src>
import jax
import jax.numpy as jnp
from jax.experimental import pallas as pl
from jax.experimental.pallas import tpu as pltpu

BN_EPS = 1e-5
NEG_SLOPE = 0.01


def _basic_block_kernel(x_ref, w1_ref, w2_ref, b1_ref, b2_ref, o_ref):
    # x_ref  : (NB, C, L)        bf16 input slab (NB batch elements)
    # w1_ref : (3, C_out, C_in)  bf16 per-tap conv1 weights, BN1 scale folded
    # w2_ref : (3, C_out, C_out) bf16 per-tap conv2 weights, BN2 scale folded
    # b*_ref : (C_out, 1)        f32 folded BN bias
    # o_ref  : (NB, C_out, L)    bf16 output slab
    nb, _, L = x_ref.shape

    # 0/1 column masks for the +-1 taps (zero-padding semantics of padding=1),
    # computed once per grid step and reused by every tap of every element.
    col = jax.lax.broadcasted_iota(jnp.int32, (1, L), 1)
    mask_first = (col > 0).astype(jnp.float32)       # zeroes column 0
    mask_last = (col < (L - 1)).astype(jnp.float32)  # zeroes column L-1

    w1_0, w1_1, w1_2 = w1_ref[0], w1_ref[1], w1_ref[2]
    w2_0, w2_1, w2_2 = w2_ref[0], w2_ref[1], w2_ref[2]
    bias1 = b1_ref[...]
    bias2 = b2_ref[...]

    def conv3(a_f32, wk0, wk1, wk2):
        # a_f32: (C, L) f32 -> (C_out, L) f32.
        # Three accumulating MXU dots (no (3C, L) im2col stack).  Taps are
        # produced with pltpu.roll (XLU slot) + boundary column masks, then
        # cast to bf16 for the MXU; accumulation stays in f32.
        a_m1 = (pltpu.roll(a_f32, shift=1, axis=1) * mask_first)      # a[t-1]
        a_p1 = (pltpu.roll(a_f32, shift=L - 1, axis=1) * mask_last)   # a[t+1]
        acc = jnp.dot(wk0, a_m1.astype(jnp.bfloat16),
                      preferred_element_type=jnp.float32)
        acc += jnp.dot(wk1, a_f32.astype(jnp.bfloat16),
                       preferred_element_type=jnp.float32)
        acc += jnp.dot(wk2, a_p1.astype(jnp.bfloat16),
                       preferred_element_type=jnp.float32)
        return acc

    for b in range(nb):  # static unroll over the batch block
        x = x_ref[b].astype(jnp.float32)  # (C, L), elementwise math in f32

        # ---- conv1 (BN1 scale folded) + bias + LeakyReLU ----
        h = conv3(x, w1_0, w1_1, w1_2) + bias1
        h = jnp.maximum(h, NEG_SLOPE * h)

        # ---- conv2 (BN2 folded) + bias + identity residual + LeakyReLU ----
        out = conv3(h, w2_0, w2_1, w2_2) + bias2 + x
        out = jnp.maximum(out, NEG_SLOPE * out)
        o_ref[b] = out.astype(o_ref.dtype)


def _pick_batch_block(N, C, L, budget_bytes=6 * 1024 * 1024):
    """Largest divisor of N whose unrolled f32 working set fits the budget."""
    per_elem = 12 * C * L * 4  # x, taps, h, taps(h), acc, out (f32, rough)
    nb = int(max(1, min(N, budget_bytes // max(per_elem, 1))))
    while N % nb:
        nb -= 1
    return nb


def _vmem_limit_bytes(NB, C_in, C_out, L):
    """Derive the scoped-VMEM request from the actual block sizes."""
    io_blocks = 2 * (NB * C_in * L * 2 + NB * C_out * L * 2)  # dbl-buffered bf16
    weights = 2 * (3 * C_out * C_in * 2) + 2 * (C_out * 4)
    temps = NB * 12 * max(C_in, C_out) * L * 4                # in-kernel f32
    est = 2 * (io_blocks + 2 * weights + temps)               # 2x headroom
    return int(min(max(est, 8 * 1024 * 1024), 100 * 1024 * 1024))


def basic_block3x3(x, w1, w2, g1, b1, m1, v1, g2, b2, m2, v2):
    """x: (N, C, L) float; conv weights in PyTorch layout (C_out, C_in, 3)."""
    N, C_in, L = x.shape
    C_out = w1.shape[0]
    assert C_in == C_out, "downsample is None, so inplanes must equal planes"
    assert L % 128 == 0, "keep L lane-dense (multiple of 128)"

    # ---- fold eval-mode BatchNorm into the conv weights / a bias ----
    # TODO(synk): PyTorch training-mode BN (batch statistics) is not
    # implemented; this is eval-mode BN with running stats.
    inv1 = g1 / jnp.sqrt(v1 + BN_EPS)
    inv2 = g2 / jnp.sqrt(v2 + BN_EPS)
    w1f = w1.astype(jnp.float32) * inv1[:, None, None]
    w2f = w2.astype(jnp.float32) * inv2[:, None, None]
    bb1 = (b1 - m1 * inv1).reshape(C_out, 1).astype(jnp.float32)
    bb2 = (b2 - m2 * inv2).reshape(C_out, 1).astype(jnp.float32)

    # Per-tap weight matrices (3, C_out, C_in), bf16 for the MXU.
    # Tap ordering matches [x_{t-1}, x_t, x_{t+1}] in the kernel.
    w1_t = jnp.transpose(w1f, (2, 0, 1)).astype(jnp.bfloat16)
    w2_t = jnp.transpose(w2f, (2, 0, 1)).astype(jnp.bfloat16)

    x_bf = x.astype(jnp.bfloat16)  # bf16 I/O: this kernel is HBM-BW bound

    NB = _pick_batch_block(N, C_in, L)
    grid = (N // NB,)

    grid_spec = pltpu.PrefetchScalarGridSpec(
        num_scalar_prefetch=0,
        grid=grid,
        in_specs=[
            pl.BlockSpec((NB, C_in, L), lambda n: (n, 0, 0)),
            pl.BlockSpec((3, C_out, C_in), lambda n: (0, 0, 0)),
            pl.BlockSpec((3, C_out, C_out), lambda n: (0, 0, 0)),
            pl.BlockSpec((C_out, 1), lambda n: (0, 0)),
            pl.BlockSpec((C_out, 1), lambda n: (0, 0)),
        ],
        out_specs=pl.BlockSpec((NB, C_out, L), lambda n: (n, 0, 0)),
    )

    return pl.pallas_call(
        _basic_block_kernel,
        out_shape=jax.ShapeDtypeStruct((N, C_out, L), jnp.bfloat16),
        grid_spec=grid_spec,
        compiler_params=pltpu.CompilerParams(
            dimension_semantics=("parallel",),
            vmem_limit_bytes=_vmem_limit_bytes(NB, C_in, C_out, L),
        ),
    )(x_bf, w1_t, w2_t, bb1, bb2)


def _reference(x, w1, w2, g1, b1, m1, v1, g2, b2, m2, v2):
    """Plain-JAX f32 reference matching the PyTorch forward (eval-mode BN)."""
    def conv(a, w):
        return jax.lax.conv_general_dilated(
            a, w, window_strides=(1,), padding=((1, 1),),
            dimension_numbers=("NCH", "OIH", "NCH"))

    def bn(a, g, b, m, v):
        return g[None, :, None] * (a - m[None, :, None]) / \
            jnp.sqrt(v[None, :, None] + BN_EPS) + b[None, :, None]

    def lrelu(a):
        return jnp.where(a >= 0, a, NEG_SLOPE * a)

    h = lrelu(bn(conv(x, w1), g1, b1, m1, v1))
    h = bn(conv(h, w2), g2, b2, m2, v2)
    return lrelu(h + x)


if __name__ == "__main__":
    key = jax.random.PRNGKey(0)
    N, C, L = 2, 16, 256  # inplanes3 == planes == C (downsample is None)

    ks = jax.random.split(key, 11)
    x = jax.random.normal(ks[0], (N, C, L), jnp.float32)
    w1 = jax.random.normal(ks[1], (C, C, 3), jnp.float32) * 0.2
    w2 = jax.random.normal(ks[2], (C, C, 3), jnp.float32) * 0.2
    g1 = 1.0 + 0.1 * jax.random.normal(ks[3], (C,), jnp.float32)
    b1 = 0.1 * jax.random.normal(ks[4], (C,), jnp.float32)
    m1 = 0.1 * jax.random.normal(ks[5], (C,), jnp.float32)
    v1 = jnp.abs(jax.random.normal(ks[6], (C,), jnp.float32)) + 0.5
    g2 = 1.0 + 0.1 * jax.random.normal(ks[7], (C,), jnp.float32)
    b2 = 0.1 * jax.random.normal(ks[8], (C,), jnp.float32)
    m2 = 0.1 * jax.random.normal(ks[9], (C,), jnp.float32)
    v2 = jnp.abs(jax.random.normal(ks[10], (C,), jnp.float32)) + 0.5

    out = basic_block3x3(x, w1, w2, g1, b1, m1, v1, g2, b2, m2, v2)
    out = jax.block_until_ready(out)
    assert out.shape == (N, C, L)

    # Reference on the same bf16-quantized input so the check isolates kernel
    # math; tolerance is loosened because the matmul operands and I/O are bf16
    # (f32 accumulation / elementwise), per the performance guidance.
    x_q = x.astype(jnp.bfloat16).astype(jnp.float32)
    ref = _reference(x_q, w1, w2, g1, b1, m1, v1, g2, b2, m2, v2)
    out_f32 = out.astype(jnp.float32)
    err = float(jnp.max(jnp.abs(out_f32 - ref)))
    assert jnp.allclose(out_f32, ref, atol=1e-1, rtol=5e-2), err

    print("KERNEL_OK")
</pallas_src>

<mosaic_0001>
module attributes {stable_mosaic.version = 11 : i64} {
  func.func @_basic_block_kernel(%arg0: i32, %arg1: memref<2x16x256xbf16, #tpu.memory_space<vmem>>, %arg2: memref<3x16x16xbf16, #tpu.memory_space<vmem>>, %arg3: memref<3x16x16xbf16, #tpu.memory_space<vmem>>, %arg4: memref<16x1xf32, #tpu.memory_space<vmem>>, %arg5: memref<16x1xf32, #tpu.memory_space<vmem>>, %arg6: memref<2x16x256xbf16, #tpu.memory_space<vmem>>) attributes {dimension_semantics = [#tpu.dimension_semantics<parallel>], iteration_bounds = array<i64: 1>, scalar_prefetch = 0 : i64, scratch_operands = 0 : i64, tpu.core_type = #tpu.core_type<tc>, window_params = [{transform_indices = @transform_0, window_bounds = array<i64: 2, 16, 256>}, {pipeline_mode = #tpu.pipeline_mode<synchronous>, transform_indices = @transform_1, window_bounds = array<i64: 3, 16, 16>}, {pipeline_mode = #tpu.pipeline_mode<synchronous>, transform_indices = @transform_2, window_bounds = array<i64: 3, 16, 16>}, {pipeline_mode = #tpu.pipeline_mode<synchronous>, transform_indices = @transform_3, window_bounds = array<i64: 16, 1>}, {pipeline_mode = #tpu.pipeline_mode<synchronous>, transform_indices = @transform_4, window_bounds = array<i64: 16, 1>}, {transform_indices = @transform_5, window_bounds = array<i64: 2, 16, 256>}]} {
    %0 = tpu.iota {dimensions = array<i32: 1>} : vector<1x256xi32>
    %c0_i32 = arith.constant 0 : i32
    %1 = vector.broadcast %c0_i32 : i32 to vector<1x256xi32>
    %2 = arith.cmpi sgt, %0, %1 : vector<1x256xi32>
    %3 = arith.extui %2 : vector<1x256xi1> to vector<1x256xi32>
    %4 = arith.sitofp %3 : vector<1x256xi32> to vector<1x256xf32>
    %c255_i32 = arith.constant 255 : i32
    %5 = vector.broadcast %c255_i32 : i32 to vector<1x256xi32>
    %6 = arith.cmpi slt, %0, %5 : vector<1x256xi32>
    %7 = arith.extui %6 : vector<1x256xi1> to vector<1x256xi32>
    %8 = arith.sitofp %7 : vector<1x256xi32> to vector<1x256xf32>
    %c0 = arith.constant 0 : index
    %c0_0 = arith.constant 0 : index
    %c0_1 = arith.constant 0 : index
    %9 = vector.load %arg2[%c0, %c0_0, %c0_1] : memref<3x16x16xbf16, #tpu.memory_space<vmem>>, vector<1x16x16xbf16>
    %10 = vector.shape_cast %9 : vector<1x16x16xbf16> to vector<16x16xbf16>
    %c1 = arith.constant 1 : index
    %c0_2 = arith.constant 0 : index
    %c0_3 = arith.constant 0 : index
    %11 = vector.load %arg2[%c1, %c0_2, %c0_3] : memref<3x16x16xbf16, #tpu.memory_space<vmem>>, vector<1x16x16xbf16>
    %12 = vector.shape_cast %11 : vector<1x16x16xbf16> to vector<16x16xbf16>
    %c2 = arith.constant 2 : index
    %c0_4 = arith.constant 0 : index
    %c0_5 = arith.constant 0 : index
    %13 = vector.load %arg2[%c2, %c0_4, %c0_5] : memref<3x16x16xbf16, #tpu.memory_space<vmem>>, vector<1x16x16xbf16>
    %14 = vector.shape_cast %13 : vector<1x16x16xbf16> to vector<16x16xbf16>
    %c0_6 = arith.constant 0 : index
    %c0_7 = arith.constant 0 : index
    %c0_8 = arith.constant 0 : index
    %15 = vector.load %arg3[%c0_6, %c0_7, %c0_8] : memref<3x16x16xbf16, #tpu.memory_space<vmem>>, vector<1x16x16xbf16>
    %16 = vector.shape_cast %15 : vector<1x16x16xbf16> to vector<16x16xbf16>
    %c1_9 = arith.constant 1 : index
    %c0_10 = arith.constant 0 : index
    %c0_11 = arith.constant 0 : index
    %17 = vector.load %arg3[%c1_9, %c0_10, %c0_11] : memref<3x16x16xbf16, #tpu.memory_space<vmem>>, vector<1x16x16xbf16>
    %18 = vector.shape_cast %17 : vector<1x16x16xbf16> to vector<16x16xbf16>
    %c2_12 = arith.constant 2 : index
    %c0_13 = arith.constant 0 : index
    %c0_14 = arith.constant 0 : index
    %19 = vector.load %arg3[%c2_12, %c0_13, %c0_14] : memref<3x16x16xbf16, #tpu.memory_space<vmem>>, vector<1x16x16xbf16>
    %20 = vector.shape_cast %19 : vector<1x16x16xbf16> to vector<16x16xbf16>
    %c0_15 = arith.constant 0 : index
    %c0_16 = arith.constant 0 : index
    %21 = vector.load %arg4[%c0_15, %c0_16] : memref<16x1xf32, #tpu.memory_space<vmem>>, vector<16x1xf32>
    %c0_17 = arith.constant 0 : index
    %c0_18 = arith.constant 0 : index
    %22 = vector.load %arg5[%c0_17, %c0_18] : memref<16x1xf32, #tpu.memory_space<vmem>>, vector<16x1xf32>
    %c0_19 = arith.constant 0 : index
    %c0_20 = arith.constant 0 : index
    %c0_21 = arith.constant 0 : index
    %23 = vector.load %arg1[%c0_19, %c0_20, %c0_21] : memref<2x16x256xbf16, #tpu.memory_space<vmem>>, vector<1x16x256xbf16>
    %24 = vector.shape_cast %23 : vector<1x16x256xbf16> to vector<16x256xbf16>
    %25 = arith.extf %24 : vector<16x256xbf16> to vector<16x256xf32>
    %c1_i32 = arith.constant 1 : i32
    %26 = tpu.dynamic_rotate %25 by %c1_i32 dim 1 : vector<16x256xf32>, i32 -> vector<16x256xf32>
    %27 = vector.broadcast %4 : vector<1x256xf32> to vector<16x256xf32>
    %28 = arith.mulf %26, %27 : vector<16x256xf32>
    %c255_i32_22 = arith.constant 255 : i32
    %29 = tpu.dynamic_rotate %25 by %c255_i32_22 dim 1 : vector<16x256xf32>, i32 -> vector<16x256xf32>
    %30 = vector.broadcast %8 : vector<1x256xf32> to vector<16x256xf32>
    %31 = arith.mulf %29, %30 : vector<16x256xf32>
    %32 = arith.truncf %28 : vector<16x256xf32> to vector<16x256xbf16>
    %cst = arith.constant dense<0.000000e+00> : vector<16x256xf32>
    %33 = tpu.matmul %10, %32, %cst {dimension_numbers = #tpu.dot_dimension_numbers<[1], [0], [0], [1], [0, 0, 1, 1], [], []>} : vector<16x16xbf16>, vector<16x256xbf16>, vector<16x256xf32> -> vector<16x256xf32>
    %34 = arith.truncf %25 : vector<16x256xf32> to vector<16x256xbf16>
    %cst_23 = arith.constant dense<0.000000e+00> : vector<16x256xf32>
    %35 = tpu.matmul %12, %34, %cst_23 {dimension_numbers = #tpu.dot_dimension_numbers<[1], [0], [0], [1], [0, 0, 1, 1], [], []>} : vector<16x16xbf16>, vector<16x256xbf16>, vector<16x256xf32> -> vector<16x256xf32>
    %36 = arith.addf %33, %35 : vector<16x256xf32>
    %37 = arith.truncf %31 : vector<16x256xf32> to vector<16x256xbf16>
    %cst_24 = arith.constant dense<0.000000e+00> : vector<16x256xf32>
    %38 = tpu.matmul %14, %37, %cst_24 {dimension_numbers = #tpu.dot_dimension_numbers<[1], [0], [0], [1], [0, 0, 1, 1], [], []>} : vector<16x16xbf16>, vector<16x256xbf16>, vector<16x256xf32> -> vector<16x256xf32>
    %39 = arith.addf %36, %38 : vector<16x256xf32>
    %40 = vector.broadcast %21 : vector<16x1xf32> to vector<16x256xf32>
    %41 = arith.addf %39, %40 : vector<16x256xf32>
    %cst_25 = arith.constant 0.00999999977 : f32
    %42 = vector.broadcast %cst_25 : f32 to vector<16x256xf32>
    %43 = arith.mulf %42, %41 : vector<16x256xf32>
    %44 = arith.maximumf %41, %43 : vector<16x256xf32>
    %c1_i32_26 = arith.constant 1 : i32
    %45 = tpu.dynamic_rotate %44 by %c1_i32_26 dim 1 : vector<16x256xf32>, i32 -> vector<16x256xf32>
    %46 = vector.broadcast %4 : vector<1x256xf32> to vector<16x256xf32>
    %47 = arith.mulf %45, %46 : vector<16x256xf32>
    %c255_i32_27 = arith.constant 255 : i32
    %48 = tpu.dynamic_rotate %44 by %c255_i32_27 dim 1 : vector<16x256xf32>, i32 -> vector<16x256xf32>
    %49 = vector.broadcast %8 : vector<1x256xf32> to vector<16x256xf32>
    %50 = arith.mulf %48, %49 : vector<16x256xf32>
    %51 = arith.truncf %47 : vector<16x256xf32> to vector<16x256xbf16>
    %cst_28 = arith.constant dense<0.000000e+00> : vector<16x256xf32>
    %52 = tpu.matmul %16, %51, %cst_28 {dimension_numbers = #tpu.dot_dimension_numbers<[1], [0], [0], [1], [0, 0, 1, 1], [], []>} : vector<16x16xbf16>, vector<16x256xbf16>, vector<16x256xf32> -> vector<16x256xf32>
    %53 = arith.truncf %44 : vector<16x256xf32> to vector<16x256xbf16>
    %cst_29 = arith.constant dense<0.000000e+00> : vector<16x256xf32>
    %54 = tpu.matmul %18, %53, %cst_29 {dimension_numbers = #tpu.dot_dimension_numbers<[1], [0], [0], [1], [0, 0, 1, 1], [], []>} : vector<16x16xbf16>, vector<16x256xbf16>, vector<16x256xf32> -> vector<16x256xf32>
    %55 = arith.addf %52, %54 : vector<16x256xf32>
    %56 = arith.truncf %50 : vector<16x256xf32> to vector<16x256xbf16>
    %cst_30 = arith.constant dense<0.000000e+00> : vector<16x256xf32>
    %57 = tpu.matmul %20, %56, %cst_30 {dimension_numbers = #tpu.dot_dimension_numbers<[1], [0], [0], [1], [0, 0, 1, 1], [], []>} : vector<16x16xbf16>, vector<16x256xbf16>, vector<16x256xf32> -> vector<16x256xf32>
    %58 = arith.addf %55, %57 : vector<16x256xf32>
    %59 = vector.broadcast %22 : vector<16x1xf32> to vector<16x256xf32>
    %60 = arith.addf %58, %59 : vector<16x256xf32>
    %61 = arith.addf %60, %25 : vector<16x256xf32>
    %cst_31 = arith.constant 0.00999999977 : f32
    %62 = vector.broadcast %cst_31 : f32 to vector<16x256xf32>
    %63 = arith.mulf %62, %61 : vector<16x256xf32>
    %64 = arith.maximumf %61, %63 : vector<16x256xf32>
    %65 = arith.truncf %64 : vector<16x256xf32> to vector<16x256xbf16>
    %c0_32 = arith.constant 0 : index
    %c0_33 = arith.constant 0 : index
    %c0_34 = arith.constant 0 : index
    %66 = vector.load %arg6[%c0_32, %c0_33, %c0_34] : memref<2x16x256xbf16, #tpu.memory_space<vmem>>, vector<1x16x256xbf16>
    %67 = vector.shape_cast %66 : vector<1x16x256xbf16> to vector<16x256xbf16>
    %68 = vector.shape_cast %65 : vector<16x256xbf16> to vector<1x16x256xbf16>
    tpu.vector_store %arg6[%c0_32, %c0_33, %c0_34], %68 {strides = array<i32>} : memref<2x16x256xbf16, #tpu.memory_space<vmem>>, vector<1x16x256xbf16>,
    %c1_35 = arith.constant 1 : index
    %c0_36 = arith.constant 0 : index
    %c0_37 = arith.constant 0 : index
    %69 = vector.load %arg1[%c1_35, %c0_36, %c0_37] : memref<2x16x256xbf16, #tpu.memory_space<vmem>>, vector<1x16x256xbf16>
    %70 = vector.shape_cast %69 : vector<1x16x256xbf16> to vector<16x256xbf16>
    %71 = arith.extf %70 : vector<16x256xbf16> to vector<16x256xf32>
    %c1_i32_38 = arith.constant 1 : i32
    %72 = tpu.dynamic_rotate %71 by %c1_i32_38 dim 1 : vector<16x256xf32>, i32 -> vector<16x256xf32>
    %73 = vector.broadcast %4 : vector<1x256xf32> to vector<16x256xf32>
    %74 = arith.mulf %72, %73 : vector<16x256xf32>
    %c255_i32_39 = arith.constant 255 : i32
    %75 = tpu.dynamic_rotate %71 by %c255_i32_39 dim 1 : vector<16x256xf32>, i32 -> vector<16x256xf32>
    %76 = vector.broadcast %8 : vector<1x256xf32> to vector<16x256xf32>
    %77 = arith.mulf %75, %76 : vector<16x256xf32>
    %78 = arith.truncf %74 : vector<16x256xf32> to vector<16x256xbf16>
    %cst_40 = arith.constant dense<0.000000e+00> : vector<16x256xf32>
    %79 = tpu.matmul %10, %78, %cst_40 {dimension_numbers = #tpu.dot_dimension_numbers<[1], [0], [0], [1], [0, 0, 1, 1], [], []>} : vector<16x16xbf16>, vector<16x256xbf16>, vector<16x256xf32> -> vector<16x256xf32>
    %80 = arith.truncf %71 : vector<16x256xf32> to vector<16x256xbf16>
    %cst_41 = arith.constant dense<0.000000e+00> : vector<16x256xf32>
    %81 = tpu.matmul %12, %80, %cst_41 {dimension_numbers = #tpu.dot_dimension_numbers<[1], [0], [0], [1], [0, 0, 1, 1], [], []>} : vector<16x16xbf16>, vector<16x256xbf16>, vector<16x256xf32> -> vector<16x256xf32>
    %82 = arith.addf %79, %81 : vector<16x256xf32>
    %83 = arith.truncf %77 : vector<16x256xf32> to vector<16x256xbf16>
    %cst_42 = arith.constant dense<0.000000e+00> : vector<16x256xf32>
    %84 = tpu.matmul %14, %83, %cst_42 {dimension_numbers = #tpu.dot_dimension_numbers<[1], [0], [0], [1], [0, 0, 1, 1], [], []>} : vector<16x16xbf16>, vector<16x256xbf16>, vector<16x256xf32> -> vector<16x256xf32>
    %85 = arith.addf %82, %84 : vector<16x256xf32>
    %86 = vector.broadcast %21 : vector<16x1xf32> to vector<16x256xf32>
    %87 = arith.addf %85, %86 : vector<16x256xf32>
    %cst_43 = arith.constant 0.00999999977 : f32
    %88 = vector.broadcast %cst_43 : f32 to vector<16x256xf32>
    %89 = arith.mulf %88, %87 : vector<16x256xf32>
    %90 = arith.maximumf %87, %89 : vector<16x256xf32>
    %c1_i32_44 = arith.constant 1 : i32
    %91 = tpu.dynamic_rotate %90 by %c1_i32_44 dim 1 : vector<16x256xf32>, i32 -> vector<16x256xf32>
    %92 = vector.broadcast %4 : vector<1x256xf32> to vector<16x256xf32>
    %93 = arith.mulf %91, %92 : vector<16x256xf32>
    %c255_i32_45 = arith.constant 255 : i32
    %94 = tpu.dynamic_rotate %90 by %c255_i32_45 dim 1 : vector<16x256xf32>, i32 -> vector<16x256xf32>
    %95 = vector.broadcast %8 : vector<1x256xf32> to vector<16x256xf32>
    %96 = arith.mulf %94, %95 : vector<16x256xf32>
    %97 = arith.truncf %93 : vector<16x256xf32> to vector<16x256xbf16>
    %cst_46 = arith.constant dense<0.000000e+00> : vector<16x256xf32>
    %98 = tpu.matmul %16, %97, %cst_46 {dimension_numbers = #tpu.dot_dimension_numbers<[1], [0], [0], [1], [0, 0, 1, 1], [], []>} : vector<16x16xbf16>, vector<16x256xbf16>, vector<16x256xf32> -> vector<16x256xf32>
    %99 = arith.truncf %90 : vector<16x256xf32> to vector<16x256xbf16>
    %cst_47 = arith.constant dense<0.000000e+00> : vector<16x256xf32>
    %100 = tpu.matmul %18, %99, %cst_47 {dimension_numbers = #tpu.dot_dimension_numbers<[1], [0], [0], [1], [0, 0, 1, 1], [], []>} : vector<16x16xbf16>, vector<16x256xbf16>, vector<16x256xf32> -> vector<16x256xf32>
    %101 = arith.addf %98, %100 : vector<16x256xf32>
    %102 = arith.truncf %96 : vector<16x256xf32> to vector<16x256xbf16>
    %cst_48 = arith.constant dense<0.000000e+00> : vector<16x256xf32>
    %103 = tpu.matmul %20, %102, %cst_48 {dimension_numbers = #tpu.dot_dimension_numbers<[1], [0], [0], [1], [0, 0, 1, 1], [], []>} : vector<16x16xbf16>, vector<16x256xbf16>, vector<16x256xf32> -> vector<16x256xf32>
    %104 = arith.addf %101, %103 : vector<16x256xf32>
    %105 = vector.broadcast %22 : vector<16x1xf32> to vector<16x256xf32>
    %106 = arith.addf %104, %105 : vector<16x256xf32>
    %107 = arith.addf %106, %71 : vector<16x256xf32>
    %cst_49 = arith.constant 0.00999999977 : f32
    %108 = vector.broadcast %cst_49 : f32 to vector<16x256xf32>
    %109 = arith.mulf %108, %107 : vector<16x256xf32>
    %110 = arith.maximumf %107, %109 : vector<16x256xf32>
    %111 = arith.truncf %110 : vector<16x256xf32> to vector<16x256xbf16>
    %c1_50 = arith.constant 1 : index
    %c0_51 = arith.constant 0 : index
    %c0_52 = arith.constant 0 : index
    %112 = vector.load %arg6[%c1_50, %c0_51, %c0_52] : memref<2x16x256xbf16, #tpu.memory_space<vmem>>, vector<1x16x256xbf16>
    %113 = vector.shape_cast %112 : vector<1x16x256xbf16> to vector<16x256xbf16>
    %114 = vector.shape_cast %111 : vector<16x256xbf16> to vector<1x16x256xbf16>
    tpu.vector_store %arg6[%c1_50, %c0_51, %c0_52], %114 {strides = array<i32>} : memref<2x16x256xbf16, #tpu.memory_space<vmem>>, vector<1x16x256xbf16>,
    return
  }
  func.func @transform_0(%arg0: i32) -> (i32, i32, i32) {
    %c0_i32 = arith.constant 0 : i32
    %c0_i32_0 = arith.constant 0 : i32
    %c0_i32_1 = arith.constant 0 : i32
    return %arg0, %c0_i32, %c0_i32_0 : i32, i32, i32
  }
  func.func @transform_1(%arg0: i32) -> (i32, i32, i32) {
    %c0_i32 = arith.constant 0 : i32
    %c0_i32_0 = arith.constant 0 : i32
    %c0_i32_1 = arith.constant 0 : i32
    %c0_i32_2 = arith.constant 0 : i32
    return %c0_i32, %c0_i32_0, %c0_i32_1 : i32, i32, i32
  }
  func.func @transform_2(%arg0: i32) -> (i32, i32, i32) {
    %c0_i32 = arith.constant 0 : i32
    %c0_i32_0 = arith.constant 0 : i32
    %c0_i32_1 = arith.constant 0 : i32
    %c0_i32_2 = arith.constant 0 : i32
    return %c0_i32, %c0_i32_0, %c0_i32_1 : i32, i32, i32
  }
  func.func @transform_3(%arg0: i32) -> (i32, i32) {
    %c0_i32 = arith.constant 0 : i32
    %c0_i32_0 = arith.constant 0 : i32
    %c0_i32_1 = arith.constant 0 : i32
    return %c0_i32, %c0_i32_0 : i32, i32
  }
  func.func @transform_4(%arg0: i32) -> (i32, i32) {
    %c0_i32 = arith.constant 0 : i32
    %c0_i32_0 = arith.constant 0 : i32
    %c0_i32_1 = arith.constant 0 : i32
    return %c0_i32, %c0_i32_0 : i32, i32
  }
  func.func @transform_5(%arg0: i32) -> (i32, i32, i32) {
    %c0_i32 = arith.constant 0 : i32
    %c0_i32_0 = arith.constant 0 : i32
    %c0_i32_1 = arith.constant 0 : i32
    return %arg0, %c0_i32, %c0_i32_0 : i32, i32, i32
  }
}

</mosaic_0001>

<llo_original>
// kernel: tpu_custom_call.1
$region0: #{tpu_custom_call.1}
  #allocation0 [shape = 'u32[]', space=smem, size = 0x4, offset = 0x4, fixed_abs, tag = 'smem constant byte address 0x4 - core index']
  #allocation1 [shape = 'u32[144,128]{1,0:T(1,128)}', space=vmem, size = 0x12000, scoped, tag = 'internal scratch']
  %s0 = inlined_call_operand.vmem [shape: bf16[2,16,256], index: 0, kind: input, shape index: {}]
  %s1 = inlined_call_operand.hbm [shape: bf16[3,16,16], index: 1, kind: input, shape index: {}]
  %s2 = inlined_call_operand.hbm [shape: bf16[3,16,16], index: 2, kind: input, shape index: {}]
  %s3 = inlined_call_operand.vmem [shape: f32[16,1], index: 3, kind: input, shape index: {}]
  %s4 = inlined_call_operand.vmem [shape: f32[16,1], index: 4, kind: input, shape index: {}]
  %s5 = inlined_call_operand.hbm [shape: bf16[2,16,256], index: 5, kind: output, shape index: {}]
  %s6 = sld [smem:[#allocation0]]
  $region38: #{tpu_custom_call.1} parent=0
    _
  %s8 = ssub.s32 1, %s6
  %s9 = scalar_select 0, %s8, %s6
  $region1: #{tpu_custom_call.1} parent=0
    #allocation2 [shape = 'u8[12288]{0}', space=vmem, size = 0x3000, scoped, tag = 'input window, operand 1, single buffered']
    #allocation3 [shape = 's32[1]{0}', space=sflag, size = 0x4, scoped, tag = 'scoped memory for tpu_custom_call.1']
    #allocation4 [shape = 's32[1]{0}', space=sflag, size = 0x4, scoped, tag = 'scoped memory for tpu_custom_call.1']
    #allocation5 [shape = 'u8[12288]{0}', space=vmem, size = 0x3000, scoped, tag = 'input window, operand 2, single buffered']
    #allocation6 [shape = 's32[1]{0}', space=sflag, size = 0x4, scoped, tag = 'scoped memory for tpu_custom_call.1']
    #allocation7 [shape = 'u8[16384]{0}', space=vmem, size = 0x4000, scoped, tag = 'output window, operand 0, single buffered']
    %10 = vsyncpa [#allocation3], 0
    %11 = vsyncpa [#allocation6], 0
    %12 = vsyncpa [#allocation4], 0
    // Predicated region
    $region2: #{tpu_custom_call.1} parent=1 // pred_check
      _
    $region3: #{tpu_custom_call.1} parent=1 // pred_check_branch
      %14 = sbr.rel (0) target = $region5
    $region4: #{tpu_custom_call.1} parent=1 // pred_region
      _
    $region5: #{tpu_custom_call.1} parent=1 // pred_fallthru
      _
    // Predicated region
    $region6: #{tpu_custom_call.1} parent=1 // pred_check
      _
    $region7: #{tpu_custom_call.1} parent=1 // pred_check_branch
      %16 = sbr.rel (0) target = $region9
    $region8: #{tpu_custom_call.1} parent=1 // pred_region
      %s18 = ssub.s32 384, 384
      %19 = vsyncadd [#allocation3], %s18
      %s20 = sshll.u32 [#allocation2], 4
      %s21 = int_to_ptr.vmem [resolvable:$true] %s20
      %26 = dma.hbm_to_vmem [thread:$0]  %s1, 384, %s21, [#allocation3], 64, 64, 4
    $region9: #{tpu_custom_call.1} parent=1 // pred_fallthru
      _
    // Predicated region
    $region10: #{tpu_custom_call.1} parent=1 // pred_check
      _
    $region11: #{tpu_custom_call.1} parent=1 // pred_check_branch
      %28 = sbr.rel (0) target = $region13
    $region12: #{tpu_custom_call.1} parent=1 // pred_region
      %s30 = ssub.s32 384, 384
      %31 = vsyncadd [#allocation6], %s30
      %s32 = sshll.u32 [#allocation5], 4
      %s33 = int_to_ptr.vmem [resolvable:$true] %s32
      %38 = dma.hbm_to_vmem [thread:$0]  %s2, 384, %s33, [#allocation6], 64, 64, 4
    $region13: #{tpu_custom_call.1} parent=1 // pred_fallthru
      _
    // Predicated region
    $region14: #{tpu_custom_call.1} parent=1 // pred_check
      _
    $region15: #{tpu_custom_call.1} parent=1 // pred_check_branch
      %40 = sbr.rel (0) target = $region17
    $region16: #{tpu_custom_call.1} parent=1 // pred_region
      _
    $region17: #{tpu_custom_call.1} parent=1 // pred_fallthru
      _
    // Predicated region
    $region18: #{tpu_custom_call.1} parent=1 // pred_check
      _
    $region19: #{tpu_custom_call.1} parent=1 // pred_check_branch
      %42 = sbr.rel (0) target = $region21
    $region20: #{tpu_custom_call.1} parent=1 // pred_region
      _
    $region21: #{tpu_custom_call.1} parent=1 // pred_fallthru
      _
    // Predicated region
    $region22: #{tpu_custom_call.1} parent=1 // pred_check
      _
    $region23: #{tpu_custom_call.1} parent=1 // pred_check_branch
      %44 = sbr.rel (0) target = $region25
    $region24: #{tpu_custom_call.1} parent=1 // pred_region
      %45 = dma.done [#allocation3], 384
    $region25: #{tpu_custom_call.1} parent=1 // pred_fallthru
      _
    // Predicated region
    $region26: #{tpu_custom_call.1} parent=1 // pred_check
      _
    $region27: #{tpu_custom_call.1} parent=1 // pred_check_branch
      %47 = sbr.rel (0) target = $region29
    $region28: #{tpu_custom_call.1} parent=1 // pred_region
      %48 = dma.done [#allocation6], 384
    $region29: #{tpu_custom_call.1} parent=1 // pred_fallthru
      _
    %v50 = vlaneseq
    %v51 = vand.u32 %v50, 127
    %v52 = vadd.s32 %v51, 128
    %vm53 = vcmp.gt.s32.totalorder %v51, 0
    %vm54 = vcmp.gt.s32.totalorder %v52, 0
    %v55 = vsel %vm53, 1, 0
    %v56 = vsel %vm54, 1, 0
    %v57 = vcvt.s32.f32 %v55
    %v58 = vcvt.s32.f32 %v56
    %vm59 = vcmp.lt.s32.totalorder %v51, 255
    %vm60 = vcmp.lt.s32.totalorder %v52, 255
    %v61 = vsel %vm59, 1, 0
    %v62 = vsel %vm60, 1, 0
    %v63 = vcvt.s32.f32 %v61
    %v64 = vcvt.s32.f32 %v62
    %v65 = vld [vmem:[#allocation2] sm:$0xf]
    %v66 = vld [vmem:[#allocation2 + $0x4] sm:$0xf]
    %s67 = scalar_lea.vmem [#allocation2], 8
    %v68 = vld [vmem:[%s67] sm:$0xf]
    %v69 = vld [vmem:[%s67 + $0x4] sm:$0xf]
    %s70 = scalar_lea.vmem [#allocation2], 16
    %v71 = vld [vmem:[%s70] sm:$0xf]
    %v72 = vld [vmem:[%s70 + $0x4] sm:$0xf]
    %v73 = vld [vmem:[#allocation5] sm:$0xf]
    %v74 = vld [vmem:[#allocation5 + $0x4] sm:$0xf]
    %s75 = scalar_lea.vmem [#allocation5], 8
    %v76 = vld [vmem:[%s75] sm:$0xf]
    %v77 = vld [vmem:[%s75 + $0x4] sm:$0xf]
    %s78 = scalar_lea.vmem [#allocation5], 16
    %v79 = vld [vmem:[%s78] sm:$0xf]
    %v80 = vld [vmem:[%s78 + $0x4] sm:$0xf]
    %v81 = vld [vmem:[%s3] sm:$0xff]
    %v82 = vld [vmem:[%s3 + $0x8] sm:$0xff]
    %v83 = vld [vmem:[%s4] sm:$0xff]
    %v84 = vld [vmem:[%s4 + $0x8] sm:$0xff]
    %v85 = vld [vmem:[%s0] sm:$0xff]
    %v86 = vld [vmem:[%s0 + $0x8] sm:$0xff]
    %v87 = vunpack.c.l.bf16 %v85
    %v88 = vunpack.c.h.bf16 %v85
    %v89 = vunpack.c.l.bf16 %v86
    %v90 = vunpack.c.h.bf16 %v86
    %91 = vrot.lane.b32.xlu0 %v87, 1
    %v92 = vpop.permute.xlu0 %91
    %93 = vrot.lane.b32.xlu0 %v89, 1
    %v94 = vpop.permute.xlu0 %93
    %95 = vrot.lane.b32.xlu0 %v88, 1
    %v96 = vpop.permute.xlu0 %95
    %97 = vrot.lane.b32.xlu0 %v90, 1
    %v98 = vpop.permute.xlu0 %97
    %vm99 = vcmp.lt.s32.totalorder %v51, 1
    %v100 = vsel %vm99, %v92, %v96
    %v101 = vsel %vm99, %v94, %v98
    %v102 = vsel %vm99, %v96, %v92
    %v103 = vsel %vm99, %v98, %v94
    %v104 = vmul.f32 %v102, %v57
    %v105 = vmul.f32 %v100, %v58
    %v106 = vmul.f32 %v103, %v57
    %v107 = vmul.f32 %v101, %v58
    %108 = vrot.lane.b32.xlu0 %v87, 127
    %v109 = vpop.permute.xlu0 %108
    %110 = vrot.lane.b32.xlu0 %v89, 127
    %v111 = vpop.permute.xlu0 %110
    %112 = vrot.lane.b32.xlu0 %v88, 127
    %v113 = vpop.permute.xlu0 %112
    %114 = vrot.lane.b32.xlu0 %v90, 127
    %v115 = vpop.permute.xlu0 %114
    %vm116 = vcmp.lt.s32.totalorder %v51, 127
    %v117 = vsel %vm116, %v109, %v113
    %v118 = vsel %vm116, %v111, %v115
    %v119 = vsel %vm116, %v113, %v109
    %v120 = vsel %vm116, %v115, %v111
    %v121 = vmul.f32 %v117, %v63
    %v122 = vmul.f32 %v119, %v64
    %v123 = vmul.f32 %v118, %v63
    %v124 = vmul.f32 %v120, %v64
    %v125 = vpack.c.bf16 %v106, %v104
    %v126 = vpack.c.bf16 %v107, %v105
    %v129 = vunpack.c.l.b16 %v68
    %v130 = vunpack.c.l.b16 %v69
    %v131 = vpack.c.b16 %v130, %v129
    %v134 = vunpack.c.l.b16 %v85
    %v135 = vunpack.c.h.b16 %v85
    %v136 = vunpack.c.l.b16 %v86
    %v137 = vunpack.c.h.b16 %v86
    %v138 = vpack.c.b16 %v136, %v134
    %v139 = vpack.c.b16 %v137, %v135
    %vm142 = vcmask 130048
    %v144 = vsel %vm142, %v131, 0
    %146 = vmatprep.subr.bf16.mxu0 0
    %147 = vmatpush1.bf16.msra.mxu0 0
    %148 = vmatprep.subr.bf16.mxu0 0
    %149 = vmatpush1.bf16.msra.mxu0 0
    %150 = vmatprep.subr.bf16.mxu0 0
    %151 = vmatpush1.bf16.msra.mxu0 0
    %152 = vmatprep.subr.bf16.mxu0 0
    %153 = vmatpush1.bf16.msra.mxu0 0
    %154 = vmatprep.subr.bf16.mxu0 0
    %155 = vmatpush1.bf16.msra.mxu0 0
    %156 = vmatprep.subr.bf16.mxu0 0
    %157 = vmatpush1.bf16.msra.mxu0 0
    %158 = vmatprep.subr.bf16.mxu0 0
    %159 = vmatpush1.bf16.msra.mxu0 0
    %160 = vmatprep.subr.bf16.mxu0 %v139
    %161 = vmatpush1.bf16.msra.mxu0 %v138
    %162 = vmatprep.subr.bf16.mxu0 0
    %163 = vmatpush2.bf16.msra.mxu0 0
    %164 = vmatprep.subr.bf16.mxu0 0
    %165 = vmatpush2.bf16.msra.mxu0 0
    %166 = vmatprep.subr.bf16.mxu0 0
    %167 = vmatpush2.bf16.msra.mxu0 0
    %168 = vmatprep.subr.bf16.mxu0 0
    %169 = vmatpush2.bf16.msra.mxu0 0
    %170 = vmatprep.subr.bf16.mxu0 0
    %171 = vmatpush2.bf16.msra.mxu0 0
    %172 = vmatprep.subr.bf16.mxu0 0
    %173 = vmatpush2.bf16.msra.mxu0 0
    %174 = vmatprep.subr.bf16.mxu0 0
    %175 = vmatpush2.bf16.msra.mxu0 0
    %176 = vmatprep.subr.bf16.mxu0 0
    %177 = vmatpush2.bf16.msra.mxu0 0
    %178 = vmatprep.mubr.bf16.mxu0 0
    %179 = vmatmul.mubr.bf16.gmra.mxu0 %v144
    %v180 = vpop.f32.mrf.mxu0
    %v181 = vadd.f32 0.0, %v180
    %v182 = vpop.f32.mrf.mxu0
    %v183 = vadd.f32 0.0, %v182
    %v184 = vpop.f32.mrf.mxu0
    %v185 = vadd.f32 0.0, %v184
    %v186 = vpop.f32.mrf.mxu0
    %v187 = vadd.f32 0.0, %v186
    %188 = vdwg.mxu0
    %v191 = vunpack.c.l.b16 %v65
    %v192 = vunpack.c.l.b16 %v66
    %v193 = vpack.c.b16 %v192, %v191
    %v195 = vsel %vm142, %v193, 0
    %197 = vmatprep.subr.bf16.mxu0 0
    %198 = vmatpush1.bf16.msra.mxu0 0
    %199 = vmatprep.subr.bf16.mxu0 0
    %200 = vmatpush1.bf16.msra.mxu0 0
    %201 = vmatprep.subr.bf16.mxu0 0
    %202 = vmatpush1.bf16.msra.mxu0 0
    %203 = vmatprep.subr.bf16.mxu0 0
    %204 = vmatpush1.bf16.msra.mxu0 0
    %205 = vmatprep.subr.bf16.mxu0 0
    %206 = vmatpush1.bf16.msra.mxu0 0
    %207 = vmatprep.subr.bf16.mxu0 0
    %208 = vmatpush1.bf16.msra.mxu0 0
    %209 = vmatprep.subr.bf16.mxu0 0
    %210 = vmatpush1.bf16.msra.mxu0 0
    %211 = vmatprep.subr.bf16.mxu0 %v126
    %212 = vmatpush1.bf16.msra.mxu0 %v125
    %213 = vmatprep.subr.bf16.mxu0 0
    %214 = vmatpush2.bf16.msra.mxu0 0
    %215 = vmatprep.subr.bf16.mxu0 0
    %216 = vmatpush2.bf16.msra.mxu0 0
    %217 = vmatprep.subr.bf16.mxu0 0
    %218 = vmatpush2.bf16.msra.mxu0 0
    %219 = vmatprep.subr.bf16.mxu0 0
    %220 = vmatpush2.bf16.msra.mxu0 0
    %221 = vmatprep.subr.bf16.mxu0 0
    %222 = vmatpush2.bf16.msra.mxu0 0
    %223 = vmatprep.subr.bf16.mxu0 0
    %224 = vmatpush2.bf16.msra.mxu0 0
    %225 = vmatprep.subr.bf16.mxu0 0
    %226 = vmatpush2.bf16.msra.mxu0 0
    %227 = vmatprep.subr.bf16.mxu0 0
    %228 = vmatpush2.bf16.msra.mxu0 0
    %229 = vmatprep.mubr.bf16.mxu0 0
    %230 = vmatmul.mubr.bf16.gmra.mxu0 %v195
    %v231 = vpop.f32.mrf.mxu0
    %v232 = vadd.f32 %v181, %v231
    %v233 = vpop.f32.mrf.mxu0
    %v234 = vadd.f32 %v183, %v233
    %v235 = vpop.f32.mrf.mxu0
    %v236 = vadd.f32 %v185, %v235
    %v237 = vpop.f32.mrf.mxu0
    %v238 = vadd.f32 %v187, %v237
    %239 = vdwg.mxu0
    %v240 = vpack.c.bf16 %v123, %v121
    %v241 = vpack.c.bf16 %v124, %v122
    %v244 = vunpack.c.l.b16 %v71
    %v245 = vunpack.c.l.b16 %v72
    %v246 = vpack.c.b16 %v245, %v244
    %v248 = vsel %vm142, %v246, 0
    %250 = vmatprep.subr.bf16.mxu0 0
    %251 = vmatpush1.bf16.msra.mxu0 0
    %252 = vmatprep.subr.bf16.mxu0 0
    %253 = vmatpush1.bf16.msra.mxu0 0
    %254 = vmatprep.subr.bf16.mxu0 0
    %255 = vmatpush1.bf16.msra.mxu0 0
    %256 = vmatprep.subr.bf16.mxu0 0
    %257 = vmatpush1.bf16.msra.mxu0 0
    %258 = vmatprep.subr.bf16.mxu0 0
    %259 = vmatpush1.bf16.msra.mxu0 0
    %260 = vmatprep.subr.bf16.mxu0 0
    %261 = vmatpush1.bf16.msra.mxu0 0
    %262 = vmatprep.subr.bf16.mxu0 0
    %263 = vmatpush1.bf16.msra.mxu0 0
    %264 = vmatprep.subr.bf16.mxu0 %v241
    %265 = vmatpush1.bf16.msra.mxu0 %v240
    %266 = vmatprep.subr.bf16.mxu0 0
    %267 = vmatpush2.bf16.msra.mxu0 0
    %268 = vmatprep.subr.bf16.mxu0 0
    %269 = vmatpush2.bf16.msra.mxu0 0
    %270 = vmatprep.subr.bf16.mxu0 0
    %271 = vmatpush2.bf16.msra.mxu0 0
    %272 = vmatprep.subr.bf16.mxu0 0
    %273 = vmatpush2.bf16.msra.mxu0 0
    %274 = vmatprep.subr.bf16.mxu0 0
    %275 = vmatpush2.bf16.msra.mxu0 0
    %276 = vmatprep.subr.bf16.mxu0 0
    %277 = vmatpush2.bf16.msra.mxu0 0
    %278 = vmatprep.subr.bf16.mxu0 0
    %279 = vmatpush2.bf16.msra.mxu0 0
    %280 = vmatprep.subr.bf16.mxu0 0
    %281 = vmatpush2.bf16.msra.mxu0 0
    %282 = vmatprep.mubr.bf16.mxu0 0
    %283 = vmatmul.mubr.bf16.gmra.mxu0 %v248
    %v284 = vpop.f32.mrf.mxu0
    %v285 = vadd.f32 0.0, %v284
    %v286 = vpop.f32.mrf.mxu0
    %v287 = vadd.f32 0.0, %v286
    %v288 = vpop.f32.mrf.mxu0
    %v289 = vadd.f32 0.0, %v288
    %v290 = vpop.f32.mrf.mxu0
    %v291 = vadd.f32 0.0, %v290
    %292 = vdwg.mxu0
    %v293 = vadd.f32 %v232, %v285
    %v294 = vadd.f32 %v234, %v287
    %v295 = vadd.f32 %v236, %v289
    %v296 = vadd.f32 %v238, %v291
    %298 = vset.pattern.permute.xlu0 0
    %299 = vperm.xlu0 %298, %v81
    %v300 = vpop.permute.xlu0 %299
    %303 = vset.pattern.permute.xlu0 0
    %304 = vperm.xlu0 %303, %v82
    %v305 = vpop.permute.xlu0 %304
    %v307 = vadd.f32 %v293, %v300
    %v308 = vadd.f32 %v294, %v300
    %v309 = vadd.f32 %v295, %v305
    %v310 = vadd.f32 %v296, %v305
    %v311 = vmul.f32 %v307, 0.01
    %v312 = vmul.f32 %v308, 0.01
    %v313 = vmul.f32 %v309, 0.01
    %v314 = vmul.f32 %v310, 0.01
    %v315 = vmax.f32 %v307, %v311
    %v316 = vmax.f32 %v308, %v312
    %v317 = vmax.f32 %v309, %v313
    %v318 = vmax.f32 %v310, %v314
    %319 = vrot.lane.b32.xlu0 %v315, 1
    %v320 = vpop.permute.xlu0 %319
    %321 = vrot.lane.b32.xlu0 %v317, 1
    %v322 = vpop.permute.xlu0 %321
    %323 = vrot.lane.b32.xlu0 %v316, 1
    %v324 = vpop.permute.xlu0 %323
    %325 = vrot.lane.b32.xlu0 %v318, 1
    %v326 = vpop.permute.xlu0 %325
    %v327 = vsel %vm99, %v320, %v324
    %v328 = vsel %vm99, %v322, %v326
    %v329 = vsel %vm99, %v324, %v320
    %v330 = vsel %vm99, %v326, %v322
    %v331 = vmul.f32 %v329, %v57
    %v332 = vmul.f32 %v327, %v58
    %v333 = vmul.f32 %v330, %v57
    %v334 = vmul.f32 %v328, %v58
    %335 = vrot.lane.b32.xlu0 %v315, 127
    %v336 = vpop.permute.xlu0 %335
    %337 = vrot.lane.b32.xlu0 %v317, 127
    %v338 = vpop.permute.xlu0 %337
    %339 = vrot.lane.b32.xlu0 %v316, 127
    %v340 = vpop.permute.xlu0 %339
    %341 = vrot.lane.b32.xlu0 %v318, 127
    %v342 = vpop.permute.xlu0 %341
    %v343 = vsel %vm116, %v336, %v340
    %v344 = vsel %vm116, %v338, %v342
    %v345 = vsel %vm116, %v340, %v336
    %v346 = vsel %vm116, %v342, %v338
    %v347 = vmul.f32 %v343, %v63
    %v348 = vmul.f32 %v345, %v64
    %v349 = vmul.f32 %v344, %v63
    %v350 = vmul.f32 %v346, %v64
    %v351 = vpack.c.bf16 %v333, %v331
    %v352 = vpack.c.bf16 %v334, %v332
    %v353 = vpack.c.bf16 %v317, %v315
    %v354 = vpack.c.bf16 %v318, %v316
    %v357 = vunpack.c.l.b16 %v76
    %v358 = vunpack.c.l.b16 %v77
    %v359 = vpack.c.b16 %v358, %v357
    %v361 = vsel %vm142, %v359, 0
    %363 = vmatprep.subr.bf16.mxu0 0
    %364 = vmatpush1.bf16.msra.mxu0 0
    %365 = vmatprep.subr.bf16.mxu0 0
    %366 = vmatpush1.bf16.msra.mxu0 0
    %367 = vmatprep.subr.bf16.mxu0 0
    %368 = vmatpush1.bf16.msra.mxu0 0
    %369 = vmatprep.subr.bf16.mxu0 0
    %370 = vmatpush1.bf16.msra.mxu0 0
    %371 = vmatprep.subr.bf16.mxu0 0
    %372 = vmatpush1.bf16.msra.mxu0 0
    %373 = vmatprep.subr.bf16.mxu0 0
    %374 = vmatpush1.bf16.msra.mxu0 0
    %375 = vmatprep.subr.bf16.mxu0 0
    %376 = vmatpush1.bf16.msra.mxu0 0
    %377 = vmatprep.subr.bf16.mxu0 %v354
    %378 = vmatpush1.bf16.msra.mxu0 %v353
    %379 = vmatprep.subr.bf16.mxu0 0
    %380 = vmatpush2.bf16.msra.mxu0 0
    %381 = vmatprep.subr.bf16.mxu0 0
    %382 = vmatpush2.bf16.msra.mxu0 0
    %383 = vmatprep.subr.bf16.mxu0 0
    %384 = vmatpush2.bf16.msra.mxu0 0
    %385 = vmatprep.subr.bf16.mxu0 0
    %386 = vmatpush2.bf16.msra.mxu0 0
    %387 = vmatprep.subr.bf16.mxu0 0
    %388 = vmatpush2.bf16.msra.mxu0 0
    %389 = vmatprep.subr.bf16.mxu0 0
    %390 = vmatpush2.bf16.msra.mxu0 0
    %391 = vmatprep.subr.bf16.mxu0 0
    %392 = vmatpush2.bf16.msra.mxu0 0
    %393 = vmatprep.subr.bf16.mxu0 0
    %394 = vmatpush2.bf16.msra.mxu0 0
    %395 = vmatprep.mubr.bf16.mxu0 0
    %396 = vmatmul.mubr.bf16.gmra.mxu0 %v361
    %v397 = vpop.f32.mrf.mxu0
    %v398 = vadd.f32 0.0, %v397
    %v399 = vpop.f32.mrf.mxu0
    %v400 = vadd.f32 0.0, %v399
    %v401 = vpop.f32.mrf.mxu0
    %v402 = vadd.f32 0.0, %v401
    %v403 = vpop.f32.mrf.mxu0
    %v404 = vadd.f32 0.0, %v403
    %405 = vdwg.mxu0
    %v408 = vunpack.c.l.b16 %v73
    %v409 = vunpack.c.l.b16 %v74
    %v410 = vpack.c.b16 %v409, %v408
    %v412 = vsel %vm142, %v410, 0
    %414 = vmatprep.subr.bf16.mxu0 0
    %415 = vmatpush1.bf16.msra.mxu0 0
    %416 = vmatprep.subr.bf16.mxu0 0
    %417 = vmatpush1.bf16.msra.mxu0 0
    %418 = vmatprep.subr.bf16.mxu0 0
    %419 = vmatpush1.bf16.msra.mxu0 0
    %420 = vmatprep.subr.bf16.mxu0 0
    %421 = vmatpush1.bf16.msra.mxu0 0
    %422 = vmatprep.subr.bf16.mxu0 0
    %423 = vmatpush1.bf16.msra.mxu0 0
    %424 = vmatprep.subr.bf16.mxu0 0
    %425 = vmatpush1.bf16.msra.mxu0 0
    %426 = vmatprep.subr.bf16.mxu0 0
    %427 = vmatpush1.bf16.msra.mxu0 0
    %428 = vmatprep.subr.bf16.mxu0 %v352
    %429 = vmatpush1.bf16.msra.mxu0 %v351
    %430 = vmatprep.subr.bf16.mxu0 0
    %431 = vmatpush2.bf16.msra.mxu0 0
    %432 = vmatprep.subr.bf16.mxu0 0
    %433 = vmatpush2.bf16.msra.mxu0 0
    %434 = vmatprep.subr.bf16.mxu0 0
    %435 = vmatpush2.bf16.msra.mxu0 0
    %436 = vmatprep.subr.bf16.mxu0 0
    %437 = vmatpush2.bf16.msra.mxu0 0
    %438 = vmatprep.subr.bf16.mxu0 0
    %439 = vmatpush2.bf16.msra.mxu0 0
    %440 = vmatprep.subr.bf16.mxu0 0
    %441 = vmatpush2.bf16.msra.mxu0 0
    %442 = vmatprep.subr.bf16.mxu0 0
    %443 = vmatpush2.bf16.msra.mxu0 0
    %444 = vmatprep.subr.bf16.mxu0 0
    %445 = vmatpush2.bf16.msra.mxu0 0
    %446 = vmatprep.mubr.bf16.mxu0 0
    %447 = vmatmul.mubr.bf16.gmra.mxu0 %v412
    %v448 = vpop.f32.mrf.mxu0
    %v449 = vadd.f32 %v398, %v448
    %v450 = vpop.f32.mrf.mxu0
    %v451 = vadd.f32 %v400, %v450
    %v452 = vpop.f32.mrf.mxu0
    %v453 = vadd.f32 %v402, %v452
    %v454 = vpop.f32.mrf.mxu0
    %v455 = vadd.f32 %v404, %v454
    %456 = vdwg.mxu0
    %v457 = vpack.c.bf16 %v349, %v347
    %v458 = vpack.c.bf16 %v350, %v348
    %v461 = vunpack.c.l.b16 %v79
    %v462 = vunpack.c.l.b16 %v80
    %v463 = vpack.c.b16 %v462, %v461
    %v465 = vsel %vm142, %v463, 0
    %467 = vmatprep.subr.bf16.mxu0 0
    %468 = vmatpush1.bf16.msra.mxu0 0
    %469 = vmatprep.subr.bf16.mxu0 0
    %470 = vmatpush1.bf16.msra.mxu0 0
    %471 = vmatprep.subr.bf16.mxu0 0
    %472 = vmatpush1.bf16.msra.mxu0 0
    %473 = vmatprep.subr.bf16.mxu0 0
    %474 = vmatpush1.bf16.msra.mxu0 0
    %475 = vmatprep.subr.bf16.mxu0 0
    %476 = vmatpush1.bf16.msra.mxu0 0
    %477 = vmatprep.subr.bf16.mxu0 0
    %478 = vmatpush1.bf16.msra.mxu0 0
    %479 = vmatprep.subr.bf16.mxu0 0
    %480 = vmatpush1.bf16.msra.mxu0 0
    %481 = vmatprep.subr.bf16.mxu0 %v458
    %482 = vmatpush1.bf16.msra.mxu0 %v457
    %483 = vmatprep.subr.bf16.mxu0 0
    %484 = vmatpush2.bf16.msra.mxu0 0
    %485 = vmatprep.subr.bf16.mxu0 0
    %486 = vmatpush2.bf16.msra.mxu0 0
    %487 = vmatprep.subr.bf16.mxu0 0
    %488 = vmatpush2.bf16.msra.mxu0 0
    %489 = vmatprep.subr.bf16.mxu0 0
    %490 = vmatpush2.bf16.msra.mxu0 0
    %491 = vmatprep.subr.bf16.mxu0 0
    %492 = vmatpush2.bf16.msra.mxu0 0
    %493 = vmatprep.subr.bf16.mxu0 0
    %494 = vmatpush2.bf16.msra.mxu0 0
    %495 = vmatprep.subr.bf16.mxu0 0
    %496 = vmatpush2.bf16.msra.mxu0 0
    %497 = vmatprep.subr.bf16.mxu0 0
    %498 = vmatpush2.bf16.msra.mxu0 0
    %499 = vmatprep.mubr.bf16.mxu0 0
    %500 = vmatmul.mubr.bf16.gmra.mxu0 %v465
    %v501 = vpop.f32.mrf.mxu0
    %v502 = vadd.f32 0.0, %v501
    %v503 = vpop.f32.mrf.mxu0
    %v504 = vadd.f32 0.0, %v503
    %v505 = vpop.f32.mrf.mxu0
    %v506 = vadd.f32 0.0, %v505
    %v507 = vpop.f32.mrf.mxu0
    %v508 = vadd.f32 0.0, %v507
    %509 = vdwg.mxu0
    %v510 = vadd.f32 %v449, %v502
    %v511 = vadd.f32 %v451, %v504
    %v512 = vadd.f32 %v453, %v506
    %v513 = vadd.f32 %v455, %v508
    %515 = vset.pattern.permute.xlu0 0
    %516 = vperm.xlu0 %515, %v83
    %v517 = vpop.permute.xlu0 %516
    %520 = vset.pattern.permute.xlu0 0
    %521 = vperm.xlu0 %520, %v84
    %v522 = vpop.permute.xlu0 %521
    %v524 = vadd.f32 %v510, %v517
    %v525 = vadd.f32 %v511, %v517
    %v526 = vadd.f32 %v512, %v522
    %v527 = vadd.f32 %v513, %v522
    %v528 = vadd.f32 %v524, %v87
    %v529 = vadd.f32 %v525, %v88
    %v530 = vadd.f32 %v526, %v89
    %v531 = vadd.f32 %v527, %v90
    %v532 = vmul.f32 %v528, 0.01
    %v533 = vmul.f32 %v529, 0.01
    %v534 = vmul.f32 %v530, 0.01
    %v535 = vmul.f32 %v531, 0.01
    %v536 = vmax.f32 %v528, %v532
    %v537 = vmax.f32 %v529, %v533
    %v538 = vmax.f32 %v530, %v534
    %v539 = vmax.f32 %v531, %v535
    %v540 = vpack.c.bf16 %v538, %v536
    %v541 = vpack.c.bf16 %v539, %v537
    %v544 = vunpack.c.l.b16 %v540
    %v545 = vunpack.c.l.b16 %v541
    %v546 = vunpack.c.h.b16 %v540
    %v547 = vunpack.c.h.b16 %v541
    %v548 = vpack.c.b16 %v545, %v544
    %v549 = vpack.c.b16 %v547, %v546
    %552 = vst [vmem:[#allocation7] sm:$0xff] %v548
    %553 = vst [vmem:[#allocation7 + $0x8] sm:$0xff] %v549
    %s554 = scalar_lea.vmem %s0, 16
    %v555 = vld [vmem:[%s554] sm:$0xff]
    %v556 = vld [vmem:[%s554 + $0x8] sm:$0xff]
    %v557 = vunpack.c.l.bf16 %v555
    %v558 = vunpack.c.h.bf16 %v555
    %v559 = vunpack.c.l.bf16 %v556
    %v560 = vunpack.c.h.bf16 %v556
    %561 = vrot.lane.b32.xlu0 %v557, 1
    %v562 = vpop.permute.xlu0 %561
    %563 = vrot.lane.b32.xlu0 %v559, 1
    %v564 = vpop.permute.xlu0 %563
    %565 = vrot.lane.b32.xlu0 %v558, 1
    %v566 = vpop.permute.xlu0 %565
    %567 = vrot.lane.b32.xlu0 %v560, 1
    %v568 = vpop.permute.xlu0 %567
    %v569 = vsel %vm99, %v562, %v566
    %v570 = vsel %vm99, %v564, %v568
    %v571 = vsel %vm99, %v566, %v562
    %v572 = vsel %vm99, %v568, %v564
    %v573 = vmul.f32 %v571, %v57
    %v574 = vmul.f32 %v569, %v58
    %v575 = vmul.f32 %v572, %v57
    %v576 = vmul.f32 %v570, %v58
    %577 = vrot.lane.b32.xlu0 %v557, 127
    %v578 = vpop.permute.xlu0 %577
    %579 = vrot.lane.b32.xlu0 %v559, 127
    %v580 = vpop.permute.xlu0 %579
    %581 = vrot.lane.b32.xlu0 %v558, 127
    %v582 = vpop.permute.xlu0 %581
    %583 = vrot.lane.b32.xlu0 %v560, 127
    %v584 = vpop.permute.xlu0 %583
    %v585 = vsel %vm116, %v578, %v582
    %v586 = vsel %vm116, %v580, %v584
    %v587 = vsel %vm116, %v582, %v578
    %v588 = vsel %vm116, %v584, %v580
    %v589 = vmul.f32 %v585, %v63
    %v590 = vmul.f32 %v587, %v64
    %v591 = vmul.f32 %v586, %v63
    %v592 = vmul.f32 %v588, %v64
    %v593 = vpack.c.bf16 %v575, %v573
    %v594 = vpack.c.bf16 %v576, %v574
    %v597 = vunpack.c.l.b16 %v555
    %v598 = vunpack.c.h.b16 %v555
    %v599 = vunpack.c.l.b16 %v556
    %v600 = vunpack.c.h.b16 %v556
    %v601 = vpack.c.b16 %v599, %v597
    %v602 = vpack.c.b16 %v600, %v598
    %605 = vmatprep.subr.bf16.mxu0 0
    %606 = vmatpush1.bf16.msra.mxu0 0
    %607 = vmatprep.subr.bf16.mxu0 0
    %608 = vmatpush1.bf16.msra.mxu0 0
    %609 = vmatprep.subr.bf16.mxu0 0
    %610 = vmatpush1.bf16.msra.mxu0 0
    %611 = vmatprep.subr.bf16.mxu0 0
    %612 = vmatpush1.bf16.msra.mxu0 0
    %613 = vmatprep.subr.bf16.mxu0 0
    %614 = vmatpush1.bf16.msra.mxu0 0
    %615 = vmatprep.subr.bf16.mxu0 0
    %616 = vmatpush1.bf16.msra.mxu0 0
    %617 = vmatprep.subr.bf16.mxu0 0
    %618 = vmatpush1.bf16.msra.mxu0 0
    %619 = vmatprep.subr.bf16.mxu0 %v602
    %620 = vmatpush1.bf16.msra.mxu0 %v601
    %621 = vmatprep.subr.bf16.mxu0 0
    %622 = vmatpush2.bf16.msra.mxu0 0
    %623 = vmatprep.subr.bf16.mxu0 0
    %624 = vmatpush2.bf16.msra.mxu0 0
    %625 = vmatprep.subr.bf16.mxu0 0
    %626 = vmatpush2.bf16.msra.mxu0 0
    %627 = vmatprep.subr.bf16.mxu0 0
    %628 = vmatpush2.bf16.msra.mxu0 0
    %629 = vmatprep.subr.bf16.mxu0 0
    %630 = vmatpush2.bf16.msra.mxu0 0
    %631 = vmatprep.subr.bf16.mxu0 0
    %632 = vmatpush2.bf16.msra.mxu0 0
    %633 = vmatprep.subr.bf16.mxu0 0
    %634 = vmatpush2.bf16.msra.mxu0 0
    %635 = vmatprep.subr.bf16.mxu0 0
    %636 = vmatpush2.bf16.msra.mxu0 0
    %637 = vmatprep.mubr.bf16.mxu0 0
    %638 = vmatmul.mubr.bf16.gmra.mxu0 %v144
    %v639 = vpop.f32.mrf.mxu0
    %v640 = vadd.f32 0.0, %v639
    %v641 = vpop.f32.mrf.mxu0
    %v642 = vadd.f32 0.0, %v641
    %v643 = vpop.f32.mrf.mxu0
    %v644 = vadd.f32 0.0, %v643
    %v645 = vpop.f32.mrf.mxu0
    %v646 = vadd.f32 0.0, %v645
    %647 = vdwg.mxu0
    %648 = vmatprep.subr.bf16.mxu0 0
    %649 = vmatpush1.bf16.msra.mxu0 0
    %650 = vmatprep.subr.bf16.mxu0 0
    %651 = vmatpush1.bf16.msra.mxu0 0
    %652 = vmatprep.subr.bf16.mxu0 0
    %653 = vmatpush1.bf16.msra.mxu0 0
    %654 = vmatprep.subr.bf16.mxu0 0
    %655 = vmatpush1.bf16.msra.mxu0 0
    %656 = vmatprep.subr.bf16.mxu0 0
    %657 = vmatpush1.bf16.msra.mxu0 0
    %658 = vmatprep.subr.bf16.mxu0 0
    %659 = vmatpush1.bf16.msra.mxu0 0
    %660 = vmatprep.subr.bf16.mxu0 0
    %661 = vmatpush1.bf16.msra.mxu0 0
    %662 = vmatprep.subr.bf16.mxu0 %v594
    %663 = vmatpush1.bf16.msra.mxu0 %v593
    %664 = vmatprep.subr.bf16.mxu0 0
    %665 = vmatpush2.bf16.msra.mxu0 0
    %666 = vmatprep.subr.bf16.mxu0 0
    %667 = vmatpush2.bf16.msra.mxu0 0
    %668 = vmatprep.subr.bf16.mxu0 0
    %669 = vmatpush2.bf16.msra.mxu0 0
    %670 = vmatprep.subr.bf16.mxu0 0
    %671 = vmatpush2.bf16.msra.mxu0 0
    %672 = vmatprep.subr.bf16.mxu0 0
    %673 = vmatpush2.bf16.msra.mxu0 0
    %674 = vmatprep.subr.bf16.mxu0 0
    %675 = vmatpush2.bf16.msra.mxu0 0
    %676 = vmatprep.subr.bf16.mxu0 0
    %677 = vmatpush2.bf16.msra.mxu0 0
    %678 = vmatprep.subr.bf16.mxu0 0
    %679 = vmatpush2.bf16.msra.mxu0 0
    %680 = vmatprep.mubr.bf16.mxu0 0
    %681 = vmatmul.mubr.bf16.gmra.mxu0 %v195
    %v682 = vpop.f32.mrf.mxu0
    %v683 = vadd.f32 %v640, %v682
    %v684 = vpop.f32.mrf.mxu0
    %v685 = vadd.f32 %v642, %v684
    %v686 = vpop.f32.mrf.mxu0
    %v687 = vadd.f32 %v644, %v686
    %v688 = vpop.f32.mrf.mxu0
    %v689 = vadd.f32 %v646, %v688
    %690 = vdwg.mxu0
    %v691 = vpack.c.bf16 %v591, %v589
    %v692 = vpack.c.bf16 %v592, %v590
    %693 = vmatprep.subr.bf16.mxu0 0
    %694 = vmatpush1.bf16.msra.mxu0 0
    %695 = vmatprep.subr.bf16.mxu0 0
    %696 = vmatpush1.bf16.msra.mxu0 0
    %697 = vmatprep.subr.bf16.mxu0 0
    %698 = vmatpush1.bf16.msra.mxu0 0
    %699 = vmatprep.subr.bf16.mxu0 0
    %700 = vmatpush1.bf16.msra.mxu0 0
    %701 = vmatprep.subr.bf16.mxu0 0
    %702 = vmatpush1.bf16.msra.mxu0 0
    %703 = vmatprep.subr.bf16.mxu0 0
    %704 = vmatpush1.bf16.msra.mxu0 0
    %705 = vmatprep.subr.bf16.mxu0 0
    %706 = vmatpush1.bf16.msra.mxu0 0
    %707 = vmatprep.subr.bf16.mxu0 %v692
    %708 = vmatpush1.bf16.msra.mxu0 %v691
    %709 = vmatprep.subr.bf16.mxu0 0
    %710 = vmatpush2.bf16.msra.mxu0 0
    %711 = vmatprep.subr.bf16.mxu0 0
    %712 = vmatpush2.bf16.msra.mxu0 0
    %713 = vmatprep.subr.bf16.mxu0 0
    %714 = vmatpush2.bf16.msra.mxu0 0
    %715 = vmatprep.subr.bf16.mxu0 0
    %716 = vmatpush2.bf16.msra.mxu0 0
    %717 = vmatprep.subr.bf16.mxu0 0
    %718 = vmatpush2.bf16.msra.mxu0 0
    %719 = vmatprep.subr.bf16.mxu0 0
    %720 = vmatpush2.bf16.msra.mxu0 0
    %721 = vmatprep.subr.bf16.mxu0 0
    %722 = vmatpush2.bf16.msra.mxu0 0
    %723 = vmatprep.subr.bf16.mxu0 0
    %724 = vmatpush2.bf16.msra.mxu0 0
    %725 = vmatprep.mubr.bf16.mxu0 0
    %726 = vmatmul.mubr.bf16.gmra.mxu0 %v248
    %v727 = vpop.f32.mrf.mxu0
    %v728 = vadd.f32 0.0, %v727
    %v729 = vpop.f32.mrf.mxu0
    %v730 = vadd.f32 0.0, %v729
    %v731 = vpop.f32.mrf.mxu0
    %v732 = vadd.f32 0.0, %v731
    %v733 = vpop.f32.mrf.mxu0
    %v734 = vadd.f32 0.0, %v733
    %735 = vdwg.mxu0
    %v736 = vadd.f32 %v683, %v728
    %v737 = vadd.f32 %v685, %v730
    %v738 = vadd.f32 %v687, %v732
    %v739 = vadd.f32 %v689, %v734
    %v740 = vadd.f32 %v736, %v300
    %v741 = vadd.f32 %v737, %v300
    %v742 = vadd.f32 %v738, %v305
    %v743 = vadd.f32 %v739, %v305
    %v744 = vmul.f32 %v740, 0.01
    %v745 = vmul.f32 %v741, 0.01
    %v746 = vmul.f32 %v742, 0.01
    %v747 = vmul.f32 %v743, 0.01
    %v748 = vmax.f32 %v740, %v744
    %v749 = vmax.f32 %v741, %v745
    %v750 = vmax.f32 %v742, %v746
    %v751 = vmax.f32 %v743, %v747
    %752 = vrot.lane.b32.xlu0 %v748, 1
    %v753 = vpop.permute.xlu0 %752
    %754 = vrot.lane.b32.xlu0 %v750, 1
    %v755 = vpop.permute.xlu0 %754
    %756 = vrot.lane.b32.xlu0 %v749, 1
    %v757 = vpop.permute.xlu0 %756
    %758 = vrot.lane.b32.xlu0 %v751, 1
    %v759 = vpop.permute.xlu0 %758
    %v760 = vsel %vm99, %v753, %v757
    %v761 = vsel %vm99, %v755, %v759
    %v762 = vsel %vm99, %v757, %v753
    %v763 = vsel %vm99, %v759, %v755
    %v764 = vmul.f32 %v762, %v57
    %v765 = vmul.f32 %v760, %v58
    %v766 = vmul.f32 %v763, %v57
    %v767 = vmul.f32 %v761, %v58
    %768 = vrot.lane.b32.xlu0 %v748, 127
    %v769 = vpop.permute.xlu0 %768
    %770 = vrot.lane.b32.xlu0 %v750, 127
    %v771 = vpop.permute.xlu0 %770
    %772 = vrot.lane.b32.xlu0 %v749, 127
    %v773 = vpop.permute.xlu0 %772
    %774 = vrot.lane.b32.xlu0 %v751, 127
    %v775 = vpop.permute.xlu0 %774
    %v776 = vsel %vm116, %v769, %v773
    %v777 = vsel %vm116, %v771, %v775
    %v778 = vsel %vm116, %v773, %v769
    %v779 = vsel %vm116, %v775, %v771
    %v780 = vmul.f32 %v776, %v63
    %v781 = vmul.f32 %v778, %v64
    %v782 = vmul.f32 %v777, %v63
    %v783 = vmul.f32 %v779, %v64
    %v784 = vpack.c.bf16 %v766, %v764
    %v785 = vpack.c.bf16 %v767, %v765
    %v786 = vpack.c.bf16 %v750, %v748
    %v787 = vpack.c.bf16 %v751, %v749
    %788 = vmatprep.subr.bf16.mxu0 0
    %789 = vmatpush1.bf16.msra.mxu0 0
    %790 = vmatprep.subr.bf16.mxu0 0
    %791 = vmatpush1.bf16.msra.mxu0 0
    %792 = vmatprep.subr.bf16.mxu0 0
    %793 = vmatpush1.bf16.msra.mxu0 0
    %794 = vmatprep.subr.bf16.mxu0 0
    %795 = vmatpush1.bf16.msra.mxu0 0
    %796 = vmatprep.subr.bf16.mxu0 0
    %797 = vmatpush1.bf16.msra.mxu0 0
    %798 = vmatprep.subr.bf16.mxu0 0
    %799 = vmatpush1.bf16.msra.mxu0 0
    %800 = vmatprep.subr.bf16.mxu0 0
    %801 = vmatpush1.bf16.msra.mxu0 0
    %802 = vmatprep.subr.bf16.mxu0 %v787
    %803 = vmatpush1.bf16.msra.mxu0 %v786
    %804 = vmatprep.subr.bf16.mxu0 0
    %805 = vmatpush2.bf16.msra.mxu0 0
    %806 = vmatprep.subr.bf16.mxu0 0
    %807 = vmatpush2.bf16.msra.mxu0 0
    %808 = vmatprep.subr.bf16.mxu0 0
    %809 = vmatpush2.bf16.msra.mxu0 0
    %810 = vmatprep.subr.bf16.mxu0 0
    %811 = vmatpush2.bf16.msra.mxu0 0
    %812 = vmatprep.subr.bf16.mxu0 0
    %813 = vmatpush2.bf16.msra.mxu0 0
    %814 = vmatprep.subr.bf16.mxu0 0
    %815 = vmatpush2.bf16.msra.mxu0 0
    %816 = vmatprep.subr.bf16.mxu0 0
    %817 = vmatpush2.bf16.msra.mxu0 0
    %818 = vmatprep.subr.bf16.mxu0 0
    %819 = vmatpush2.bf16.msra.mxu0 0
    %820 = vmatprep.mubr.bf16.mxu0 0
    %821 = vmatmul.mubr.bf16.gmra.mxu0 %v361
    %v822 = vpop.f32.mrf.mxu0
    %v823 = vadd.f32 0.0, %v822
    %v824 = vpop.f32.mrf.mxu0
    %v825 = vadd.f32 0.0, %v824
    %v826 = vpop.f32.mrf.mxu0
    %v827 = vadd.f32 0.0, %v826
    %v828 = vpop.f32.mrf.mxu0
    %v829 = vadd.f32 0.0, %v828
    %830 = vdwg.mxu0
    %831 = vmatprep.subr.bf16.mxu0 0
    %832 = vmatpush1.bf16.msra.mxu0 0
    %833 = vmatprep.subr.bf16.mxu0 0
    %834 = vmatpush1.bf16.msra.mxu0 0
    %835 = vmatprep.subr.bf16.mxu0 0
    %836 = vmatpush1.bf16.msra.mxu0 0
    %837 = vmatprep.subr.bf16.mxu0 0
    %838 = vmatpush1.bf16.msra.mxu0 0
    %839 = vmatprep.subr.bf16.mxu0 0
    %840 = vmatpush1.bf16.msra.mxu0 0
    %841 = vmatprep.subr.bf16.mxu0 0
    %842 = vmatpush1.bf16.msra.mxu0 0
    %843 = vmatprep.subr.bf16.mxu0 0
    %844 = vmatpush1.bf16.msra.mxu0 0
    %845 = vmatprep.subr.bf16.mxu0 %v785
    %846 = vmatpush1.bf16.msra.mxu0 %v784
    %847 = vmatprep.subr.bf16.mxu0 0
    %848 = vmatpush2.bf16.msra.mxu0 0
    %849 = vmatprep.subr.bf16.mxu0 0
    %850 = vmatpush2.bf16.msra.mxu0 0
    %851 = vmatprep.subr.bf16.mxu0 0
    %852 = vmatpush2.bf16.msra.mxu0 0
    %853 = vmatprep.subr.bf16.mxu0 0
    %854 = vmatpush2.bf16.msra.mxu0 0
    %855 = vmatprep.subr.bf16.mxu0 0
    %856 = vmatpush2.bf16.msra.mxu0 0
    %857 = vmatprep.subr.bf16.mxu0 0
    %858 = vmatpush2.bf16.msra.mxu0 0
    %859 = vmatprep.subr.bf16.mxu0 0
    %860 = vmatpush2.bf16.msra.mxu0 0
    %861 = vmatprep.subr.bf16.mxu0 0
    %862 = vmatpush2.bf16.msra.mxu0 0
    %863 = vmatprep.mubr.bf16.mxu0 0
    %864 = vmatmul.mubr.bf16.gmra.mxu0 %v412
    %v865 = vpop.f32.mrf.mxu0
    %v866 = vadd.f32 %v823, %v865
    %v867 = vpop.f32.mrf.mxu0
    %v868 = vadd.f32 %v825, %v867
    %v869 = vpop.f32.mrf.mxu0
    %v870 = vadd.f32 %v827, %v869
    %v871 = vpop.f32.mrf.mxu0
    %v872 = vadd.f32 %v829, %v871
    %873 = vdwg.mxu0
    %v874 = vpack.c.bf16 %v782, %v780
    %v875 = vpack.c.bf16 %v783, %v781
    %876 = vmatprep.subr.bf16.mxu0 0
    %877 = vmatpush1.bf16.msra.mxu0 0
    %878 = vmatprep.subr.bf16.mxu0 0
    %879 = vmatpush1.bf16.msra.mxu0 0
    %880 = vmatprep.subr.bf16.mxu0 0
    %881 = vmatpush1.bf16.msra.mxu0 0
    %882 = vmatprep.subr.bf16.mxu0 0
    %883 = vmatpush1.bf16.msra.mxu0 0
    %884 = vmatprep.subr.bf16.mxu0 0
    %885 = vmatpush1.bf16.msra.mxu0 0
    %886 = vmatprep.subr.bf16.mxu0 0
    %887 = vmatpush1.bf16.msra.mxu0 0
    %888 = vmatprep.subr.bf16.mxu0 0
    %889 = vmatpush1.bf16.msra.mxu0 0
    %890 = vmatprep.subr.bf16.mxu0 %v875
    %891 = vmatpush1.bf16.msra.mxu0 %v874
    %892 = vmatprep.subr.bf16.mxu0 0
    %893 = vmatpush2.bf16.msra.mxu0 0
    %894 = vmatprep.subr.bf16.mxu0 0
    %895 = vmatpush2.bf16.msra.mxu0 0
    %896 = vmatprep.subr.bf16.mxu0 0
    %897 = vmatpush2.bf16.msra.mxu0 0
    %898 = vmatprep.subr.bf16.mxu0 0
    %899 = vmatpush2.bf16.msra.mxu0 0
    %900 = vmatprep.subr.bf16.mxu0 0
    %901 = vmatpush2.bf16.msra.mxu0 0
    %902 = vmatprep.subr.bf16.mxu0 0
    %903 = vmatpush2.bf16.msra.mxu0 0
    %904 = vmatprep.subr.bf16.mxu0 0
    %905 = vmatpush2.bf16.msra.mxu0 0
    %906 = vmatprep.subr.bf16.mxu0 0
    %907 = vmatpush2.bf16.msra.mxu0 0
    %908 = vmatprep.mubr.bf16.mxu0 0
    %909 = vmatmul.mubr.bf16.gmra.mxu0 %v465
    %v910 = vpop.f32.mrf.mxu0
    %v911 = vadd.f32 0.0, %v910
    %v912 = vpop.f32.mrf.mxu0
    %v913 = vadd.f32 0.0, %v912
    %v914 = vpop.f32.mrf.mxu0
    %v915 = vadd.f32 0.0, %v914
    %v916 = vpop.f32.mrf.mxu0
    %v917 = vadd.f32 0.0, %v916
    %918 = vdwg.mxu0
    %v919 = vadd.f32 %v866, %v911
    %v920 = vadd.f32 %v868, %v913
    %v921 = vadd.f32 %v870, %v915
    %v922 = vadd.f32 %v872, %v917
    %v923 = vadd.f32 %v919, %v517
    %v924 = vadd.f32 %v920, %v517
    %v925 = vadd.f32 %v921, %v522
    %v926 = vadd.f32 %v922, %v522
    %v927 = vadd.f32 %v923, %v557
    %v928 = vadd.f32 %v924, %v558
    %v929 = vadd.f32 %v925, %v559
    %v930 = vadd.f32 %v926, %v560
    %v931 = vmul.f32 %v927, 0.01
    %v932 = vmul.f32 %v928, 0.01
    %v933 = vmul.f32 %v929, 0.01
    %v934 = vmul.f32 %v930, 0.01
    %v935 = vmax.f32 %v927, %v931
    %v936 = vmax.f32 %v928, %v932
    %v937 = vmax.f32 %v929, %v933
    %v938 = vmax.f32 %v930, %v934
    %v939 = vpack.c.bf16 %v937, %v935
    %v940 = vpack.c.bf16 %v938, %v936
    %v943 = vunpack.c.l.b16 %v939
    %v944 = vunpack.c.l.b16 %v940
    %v945 = vunpack.c.h.b16 %v939
    %v946 = vunpack.c.h.b16 %v940
    %v947 = vpack.c.b16 %v944, %v943
    %v948 = vpack.c.b16 %v946, %v945
    %s951 = scalar_lea.vmem [#allocation7], 16
    %952 = vst [vmem:[%s951] sm:$0xff] %v947
    %953 = vst [vmem:[%s951 + $0x8] sm:$0xff] %v948
    // Predicated region
    $region30: #{tpu_custom_call.1} parent=1 // pred_check
      _
    $region31: #{tpu_custom_call.1} parent=1 // pred_check_branch
      %955 = sbr.rel (0) target = $region33
    $region32: #{tpu_custom_call.1} parent=1 // pred_region
      %s957 = ssub.s32 512, 512
      %958 = vsyncadd [#allocation4], %s957
      %s959 = sshll.u32 [#allocation7], 4
      %s960 = int_to_ptr.vmem [resolvable:$true] %s959
      %965 = dma.vmem_to_hbm [thread:$0]  %s960, 512, %s5, [#allocation4], 128, 128, 8
    $region33: #{tpu_custom_call.1} parent=1 // pred_fallthru
      _
    // Predicated region
    $region34: #{tpu_custom_call.1} parent=1 // pred_check
      _
    $region35: #{tpu_custom_call.1} parent=1 // pred_check_branch
      %967 = sbr.rel (0) target = $region37
    $region36: #{tpu_custom_call.1} parent=1 // pred_region
      %968 = dma.done [#allocation4], 512
    $region37: #{tpu_custom_call.1} parent=1 // pred_fallthru
      _
    %969 = vsyncpa [#allocation3], 1
    %970 = vsyncpa [#allocation6], 1
    %971 = vsyncpa [#allocation4], 1

</llo_original>
